<compile_context>
chip_gen: v5e
topology: v5e:2x2
jax: 0.10.0
libtpu: 0.0.40
codegen_flags: <defaults>
</compile_context>

<pallas_src>
import jax
import jax.numpy as jnp
from jax.experimental import pallas as pl
from jax.experimental.pallas import tpu as pltpu


def _round_up(x, m):
    return ((x + m - 1) // m) * m


def dense_block_kernel(x_ref, ss_ref, w_ref, b_ref, o_ref):
    """Computes one (tile_b, tile_n) output block; reduction over the K grid axis."""
    k = pl.program_id(2)

    @pl.when(k == 0)
    def _():
        # Output block is resident across K; seed it with the bias (no scratch acc).
        o_ref[...] = jnp.broadcast_to(b_ref[...], o_ref.shape)

    # BatchNorm folded to per-feature scale/shift, then ReLU, in f32 on the VPU
    # (handles f32 or bf16 x storage; v5e has no native bf16 vector ALU).
    scale = ss_ref[0:1, :]                       # (1, tile_k)
    shift = ss_ref[1:2, :]                       # (1, tile_k)
    h = jnp.maximum(x_ref[...].astype(jnp.float32) * scale + shift, 0.0)
    # Dropout: identity at inference time (eval mode).
    # bf16 operands feed the MXU; accumulate in f32 directly in the output block.
    o_ref[...] += jnp.dot(h.astype(jnp.bfloat16), w_ref[...],
                          preferred_element_type=jnp.float32)


def dense_block(x, gamma, beta, running_mean, running_var, weight, bias,
                eps=1e-5, *, max_tile_b=1024, max_tile_n=512, max_tile_k=1024):
    """x: (B, Cin) f32 or bf16. weight: (Cout, Cin) as in torch.nn.Linear.
    Returns (B, Cout) f32."""
    B, Cin = x.shape
    Cout = weight.shape[0]
    f32 = jnp.float32

    # Defensive alignment of the tile caps.
    max_tile_b = max(8, (max_tile_b // 8) * 8)
    max_tile_n = max(128, (max_tile_n // 128) * 128)
    max_tile_k = max(128, (max_tile_k // 128) * 128)

    # --- N (Cout): lane-dense 128-multiple; one N tile covering Cout when it fits. ---
    Cout_p = _round_up(Cout, 128)
    if Cout_p <= max_tile_n:
        tile_n = Cout_p
    else:
        tile_n = max_tile_n
        Cout_p = _round_up(Cout, tile_n)

    # --- K (Cin): keep the whole reduction in one tile when it fits, so x needs no
    # padded HBM copy and is read exactly once per row tile. ---
    if Cin <= max_tile_k:
        tile_k = Cin
        Cin_p = Cin
        x_in = x                      # no copy; streamed in the caller's dtype
    else:
        tile_k = max_tile_k
        Cin_p = _round_up(Cin, tile_k)
        # K is split -> x is re-streamed once per N tile; cast to bf16 while padding
        # so the repeated x stream costs half the HBM bytes (padded cols get
        # scale=shift=0 below, so they contribute exactly 0 to the reduction).
        x_in = jnp.pad(x.astype(jnp.bfloat16), ((0, 0), (0, Cin_p - Cin)))

    # --- M (batch): ragged edge handled by Pallas; no padded copy of x. ---
    tile_b = B if B <= max_tile_b else max_tile_b
    grid_m = pl.cdiv(B, tile_b)
    grid_n = Cout_p // tile_n
    if grid_m * grid_n == 1 and B > 8:
        # Keep >= 2 programs on a "parallel" axis so both v7x TensorCores get work
        # (costs only one extra ~0.35 us grid step on single-TC v5e/v6e).
        tile_b = _round_up(pl.cdiv(B, 2), 8)
        grid_m = pl.cdiv(B, tile_b)
    grid_k = Cin_p // tile_k
    grid = (grid_m, grid_n, grid_k)

    # Fold BN running stats + affine into per-feature scale/shift. (If the params are
    # static across calls, hoist this fold + the weight transpose/cast out of the
    # per-call path and cache the results.)
    inv_std = 1.0 / jnp.sqrt(running_var.astype(f32) + eps)
    scale = gamma.astype(f32) * inv_std
    shift = beta.astype(f32) - running_mean.astype(f32) * scale
    pad_k = Cin_p - Cin
    ss = jnp.stack([jnp.pad(scale, (0, pad_k)),
                    jnp.pad(shift, (0, pad_k))])                         # (2, Cin_p) f32

    w_t = jnp.pad(weight.T.astype(jnp.bfloat16),
                  ((0, Cin_p - Cin), (0, Cout_p - Cout)))                # (Cin_p, Cout_p)
    b_p = jnp.pad(bias.astype(f32), (0, Cout_p - Cout)).reshape(1, Cout_p)

    # VMEM budget: double-buffered blocks; the f32 output block doubles as accumulator.
    x_item = jnp.dtype(x_in.dtype).itemsize
    est = 2 * (tile_b * tile_k * x_item         # x block
               + 2 * tile_k * 4                 # scale/shift
               + tile_k * tile_n * 2            # W^T block (bf16)
               + tile_n * 4                     # bias
               + tile_b * tile_n * 4)           # output block (f32 accumulator)
    try:
        phys_vmem = getattr(pltpu.get_tpu_info(), "vmem_capacity_bytes", None) or (64 << 20)
    except Exception:
        phys_vmem = 64 << 20                    # conservative (v7x-sized) fallback
    vmem_cap = int(0.75 * phys_vmem)            # ~48 MiB on v7x, ~96 MiB on v5e/v6e
    vmem_limit = int(min(vmem_cap, max(2 * est, 16 * 1024 * 1024)))

    out = pl.pallas_call(
        dense_block_kernel,
        out_shape=jax.ShapeDtypeStruct((B, Cout_p), jnp.float32),
        grid_spec=pltpu.PrefetchScalarGridSpec(
            num_scalar_prefetch=0,
            grid=grid,
            in_specs=[
                pl.BlockSpec((tile_b, tile_k), lambda i, j, k: (i, k)),   # x
                pl.BlockSpec((2, tile_k), lambda i, j, k: (0, k)),        # scale/shift
                pl.BlockSpec((tile_k, tile_n), lambda i, j, k: (k, j)),   # W^T (bf16)
                pl.BlockSpec((1, tile_n), lambda i, j, k: (0, j)),        # bias
            ],
            out_specs=pl.BlockSpec((tile_b, tile_n), lambda i, j, k: (i, j)),
        ),
        compiler_params=pltpu.CompilerParams(
            dimension_semantics=("parallel", "parallel", "arbitrary"),
            vmem_limit_bytes=vmem_limit,
        ),
    )(x_in, ss, w_t, b_p)

    return out[:, :Cout]


def dense_block_ref(x, gamma, beta, running_mean, running_var, weight, bias, eps=1e-5):
    h = (x - running_mean) / jnp.sqrt(running_var + eps) * gamma + beta
    h = jnp.maximum(h, 0.0)
    return h @ weight.T + bias


if __name__ == "__main__":
    def make_inputs(key, B, Cin, Cout):
        ks = jax.random.split(key, 7)
        x = jax.random.normal(ks[0], (B, Cin), dtype=jnp.float32)
        gamma = jax.random.uniform(ks[1], (Cin,), minval=0.5, maxval=1.5, dtype=jnp.float32)
        beta = jax.random.normal(ks[2], (Cin,), dtype=jnp.float32) * 0.1
        rm = jax.random.normal(ks[3], (Cin,), dtype=jnp.float32) * 0.1
        rv = jax.random.uniform(ks[4], (Cin,), minval=0.5, maxval=1.5, dtype=jnp.float32)
        w = jax.random.normal(ks[5], (Cout, Cin), dtype=jnp.float32) / jnp.sqrt(Cin)
        b = jax.random.normal(ks[6], (Cout,), dtype=jnp.float32) * 0.1
        return x, gamma, beta, rm, rv, w, b

    key = jax.random.PRNGKey(0)
    k1, k2 = jax.random.split(key)

    # Case 1: default tiles -> single K/N tile, no x copy, two M programs (v7x TCs),
    # ragged M edge (200 rows, 104-row tiles).
    args1 = make_inputs(k1, 200, 32, 64)
    out1 = jax.block_until_ready(dense_block(*args1))
    ref1 = dense_block_ref(*args1)
    assert out1.shape == (200, 64)
    assert jnp.allclose(out1, ref1, atol=2e-2, rtol=2e-2), "case 1 mismatch vs reference"

    # Case 2: small forced tiles -> exercises the K-split (bf16 x padding), multiple
    # N tiles and the ragged M edge path.
    args2 = make_inputs(k2, 260, 384, 200)
    out2 = jax.block_until_ready(
        dense_block(*args2, max_tile_b=128, max_tile_n=128, max_tile_k=256))
    ref2 = dense_block_ref(*args2)
    assert out2.shape == (260, 200)
    assert jnp.allclose(out2, ref2, atol=2e-2, rtol=2e-2), "case 2 mismatch vs reference"

    print("KERNEL_OK")
</pallas_src>

<mosaic_0001>
module attributes {stable_mosaic.version = 11 : i64} {
  func.func @dense_block_kernel(%arg0: i32, %arg1: i32, %arg2: i32, %arg3: memref<104x32xf32, #tpu.memory_space<vmem>>, %arg4: memref<2x32xf32, #tpu.memory_space<vmem>>, %arg5: memref<32x128xbf16, #tpu.memory_space<vmem>>, %arg6: memref<1x128xf32, #tpu.memory_space<vmem>>, %arg7: memref<104x128xf32, #tpu.memory_space<vmem>>) attributes {dimension_semantics = [#tpu.dimension_semantics<parallel>, #tpu.dimension_semantics<parallel>, #tpu.dimension_semantics<arbitrary>], iteration_bounds = array<i64: 2, 1, 1>, scalar_prefetch = 0 : i64, scratch_operands = 0 : i64, tpu.core_type = #tpu.core_type<tc>, window_params = [{transform_indices = @transform_0, window_bounds = array<i64: 104, 32>}, {transform_indices = @transform_1, window_bounds = array<i64: 2, 32>}, {transform_indices = @transform_2, window_bounds = array<i64: 32, 128>}, {transform_indices = @transform_3, window_bounds = array<i64: 1, 128>}, {transform_indices = @transform_4, window_bounds = array<i64: 104, 128>}]} {
    %c0_i32 = arith.constant 0 : i32
    %0 = arith.cmpi eq, %arg2, %c0_i32 : i32
    %1 = arith.extui %0 : i1 to i32
    %c0_i32_0 = arith.constant 0 : i32
    %2 = arith.cmpi ne, %1, %c0_i32_0 : i32
    scf.if %2 {
      %c0_12 = arith.constant 0 : index
      %c0_13 = arith.constant 0 : index
      %18 = vector.load %arg6[%c0_12, %c0_13] : memref<1x128xf32, #tpu.memory_space<vmem>>, vector<1x128xf32>
      %19 = vector.shape_cast %18 : vector<1x128xf32> to vector<1x128xf32>
      %20 = vector.broadcast %19 : vector<1x128xf32> to vector<104x128xf32>
      %c0_14 = arith.constant 0 : index
      %c0_15 = arith.constant 0 : index
      %21 = vector.load %arg7[%c0_14, %c0_15] : memref<104x128xf32, #tpu.memory_space<vmem>>, vector<104x128xf32>
      tpu.vector_store %arg7[%c0_14, %c0_15], %20 {strides = array<i32>} : memref<104x128xf32, #tpu.memory_space<vmem>>, vector<104x128xf32>,
    } else {
    }
    %c0 = arith.constant 0 : index
    %c0_1 = arith.constant 0 : index
    %3 = vector.load %arg4[%c0, %c0_1] : memref<2x32xf32, #tpu.memory_space<vmem>>, vector<1x32xf32>
    %c1 = arith.constant 1 : index
    %c0_2 = arith.constant 0 : index
    %4 = vector.load %arg4[%c1, %c0_2] : memref<2x32xf32, #tpu.memory_space<vmem>>, vector<1x32xf32>
    %c0_3 = arith.constant 0 : index
    %c0_4 = arith.constant 0 : index
    %5 = vector.load %arg3[%c0_3, %c0_4] : memref<104x32xf32, #tpu.memory_space<vmem>>, vector<104x32xf32>
    %6 = vector.broadcast %3 : vector<1x32xf32> to vector<104x32xf32>
    %7 = arith.mulf %5, %6 : vector<104x32xf32>
    %8 = vector.broadcast %4 : vector<1x32xf32> to vector<104x32xf32>
    %9 = arith.addf %7, %8 : vector<104x32xf32>
    %cst = arith.constant 0.000000e+00 : f32
    %10 = vector.broadcast %cst : f32 to vector<104x32xf32>
    %11 = arith.maximumf %9, %10 : vector<104x32xf32>
    %c0_5 = arith.constant 0 : index
    %c0_6 = arith.constant 0 : index
    %12 = vector.load %arg7[%c0_5, %c0_6] : memref<104x128xf32, #tpu.memory_space<vmem>>, vector<104x128xf32>
    %13 = arith.truncf %11 : vector<104x32xf32> to vector<104x32xbf16>
    %c0_7 = arith.constant 0 : index
    %c0_8 = arith.constant 0 : index
    %14 = vector.load %arg5[%c0_7, %c0_8] : memref<32x128xbf16, #tpu.memory_space<vmem>>, vector<32x128xbf16>
    %cst_9 = arith.constant dense<0.000000e+00> : vector<104x128xf32>
    %15 = tpu.matmul %13, %14, %cst_9 {dimension_numbers = #tpu.dot_dimension_numbers<[1], [0], [0], [1], [0, 0, 1, 1], [], []>} : vector<104x32xbf16>, vector<32x128xbf16>, vector<104x128xf32> -> vector<104x128xf32>
    %16 = arith.addf %12, %15 : vector<104x128xf32>
    %c0_10 = arith.constant 0 : index
    %c0_11 = arith.constant 0 : index
    %17 = vector.load %arg7[%c0_10, %c0_11] : memref<104x128xf32, #tpu.memory_space<vmem>>, vector<104x128xf32>
    tpu.vector_store %arg7[%c0_10, %c0_11], %16 {strides = array<i32>} : memref<104x128xf32, #tpu.memory_space<vmem>>, vector<104x128xf32>,
    return
  }
  func.func @transform_0(%arg0: i32, %arg1: i32, %arg2: i32) -> (i32, i32) {
    %c0_i32 = arith.constant 0 : i32
    return %arg0, %arg2 : i32, i32
  }
  func.func @transform_1(%arg0: i32, %arg1: i32, %arg2: i32) -> (i32, i32) {
    %c0_i32 = arith.constant 0 : i32
    %c0_i32_0 = arith.constant 0 : i32
    return %c0_i32, %arg2 : i32, i32
  }
  func.func @transform_2(%arg0: i32, %arg1: i32, %arg2: i32) -> (i32, i32) {
    %c0_i32 = arith.constant 0 : i32
    return %arg2, %arg1 : i32, i32
  }
  func.func @transform_3(%arg0: i32, %arg1: i32, %arg2: i32) -> (i32, i32) {
    %c0_i32 = arith.constant 0 : i32
    %c0_i32_0 = arith.constant 0 : i32
    return %c0_i32, %arg1 : i32, i32
  }
  func.func @transform_4(%arg0: i32, %arg1: i32, %arg2: i32) -> (i32, i32) {
    %c0_i32 = arith.constant 0 : i32
    return %arg0, %arg1 : i32, i32
  }
}

</mosaic_0001>

<llo_original>
// kernel: tpu_custom_call.1
$region0: #{tpu_custom_call.1}
  #allocation0 [shape = 'u32[]', space=smem, size = 0x4, offset = 0x4, fixed_abs, tag = 'smem constant byte address 0x4 - core index']
  #allocation1 [shape = 'u32[72,128]{1,0:T(1,128)}', space=vmem, size = 0x9000, scoped, tag = 'internal scratch']
  %s0 = inlined_call_operand.vmem [shape: f32[200,32], index: 0, kind: input, shape index: {}]
  %s1 = inlined_call_operand.vmem [shape: f32[2,32], index: 1, kind: input, shape index: {}]
  %s2 = inlined_call_operand.vmem [shape: bf16[32,128], index: 2, kind: input, shape index: {}]
  %s3 = inlined_call_operand.vmem [shape: f32[1,128], index: 3, kind: input, shape index: {}]
  %s4 = inlined_call_operand.hbm [shape: f32[200,128], index: 4, kind: output, shape index: {}]
  %s5 = sld [smem:[#allocation0]]
  $region53: #{tpu_custom_call.1} parent=0
    _
  %s7 = ssub.s32 1, %s5
  %s8 = scalar_select 0, %s7, %s5
  $region1: #{tpu_custom_call.1} parent=0
    #allocation2 [shape = 'u8[106496]{0}', space=vmem, size = 0x1a000, scoped, tag = 'output window, operand 0']
    #allocation3 [shape = 's32[2]{0}', space=sflag, size = 0x8, scoped, tag = 'scoped memory for tpu_custom_call.1']
    %9 = vsyncpa [#allocation3], 0
    %s10 = scalar_lea.sflag [#allocation3], 1
    %11 = vsyncpa %s10, 0
    loop: start=0, step=1, limit=4
    $region2: #{tpu_custom_call.1} parent=1 // loop_pre_header
      _
    $region3: #{tpu_custom_call.1} parent=1 // loop_header
      %s13 = sphi 0, %s17
      %p14 = scmp.ge.s32.totalorder %s13, 4
      %s20 = sphi 0, %s39
      %s21 = sphi 0, %s35
      %s22 = sphi 0, %s31
      %s23 = sphi 0, %s20
      %s24 = sphi 0, %s21
      %s25 = sphi 0, %s22
      %s26 = sphi 0, %s23
      %s27 = sphi 0, %s24
      %s28 = sphi 0, %s25
      %s44 = sphi 0, %s46
      %s47 = sphi 0, %s44
      %s48 = sphi 0, %s47
      %s64 = sphi 0, %s48
      %s70 = sphi 0, %s72
      %s73 = sphi 0, %s70
      %s74 = sphi 0, %s73
      %s90 = sphi 0, %s74
      %s98 = sphi 0, %s100
      %s101 = sphi 0, %s98
      %s102 = sphi 0, %s101
      %s118 = sphi 0, %s102
      %s124 = sphi 0, %s126
      %s127 = sphi 0, %s124
      %s128 = sphi 0, %s127
      %s144 = sphi 0, %s128
      %s152 = sphi 0, %s154
      %s155 = sphi 0, %s152
      %s156 = sphi 0, %s155
      %s172 = sphi 0, %s156
    $region4: #{tpu_custom_call.1} parent=1 // loop_header_branch
      %16 = sbr.rel (%p14) target = $region8
    $region5: #{tpu_custom_call.1} parent=1 // loop_body
      %s18 = ssub.s32 %s13, 1
      %s19 = ssub.s32 %s13, 2
      %s29 = sadd.s32 1, %s22
      %p30 = scmp.ge.s32.totalorder %s29, 1
      %s31 = scalar_select %p30, 0, %s29
      %s32 = sadd.s32 1, %s21
      %s33 = scalar_select %p30, %s32, %s21
      %p34 = scmp.ge.s32.totalorder %s33, 1
      %s35 = scalar_select %p34, 0, %s33
      %s36 = sadd.s32 1, %s20
      %s37 = scalar_select %p34, %s36, %s20
      %p38 = scmp.ge.s32.totalorder %s37, 2
      %s39 = scalar_select %p38, 0, %s37
      %s40 = ssub.s32 %s20, %s39
      %s41 = ssub.s32 %s22, %s31
      %s42 = sor.u32 %s40, %s41
      %p43 = scmp.eq.s32.totalorder %s42, 0
      %s45 = sadd.s32 %s44, 1
      %s46 = scalar_select %p43, %s44, %s45
      %p49 = pneg %p43
      %p50 = scmp.eq.s32.totalorder %s13, 1
      %p51 = por %p49, %p50
      %p52 = scmp.ne.s32.totalorder %s44, %s47
      %p53 = scmp.eq.s32.totalorder %s13, 0
      %p54 = por %p52, %p53
      %p55 = scmp.ne.s32.totalorder %s44, %s47
      %p56 = scmp.eq.s32.totalorder %s18, 1
      %p57 = por %p55, %p56
      %p58 = scmp.ne.s32.totalorder %s47, %s48
      %p59 = scmp.eq.s32.totalorder %s18, 0
      %p60 = por %p58, %p59
      %p61 = scmp.ne.s32.totalorder %s47, %s48
      %p62 = scmp.eq.s32.totalorder %s19, 1
      %p63 = por %p61, %p62
      %p65 = scmp.ne.s32.totalorder %s48, %s64
      %p66 = scmp.eq.s32.totalorder %s19, 0
      %p67 = por %p65, %p66
      %s68 = ssub.s32 %s22, %s31
      %p69 = scmp.eq.s32.totalorder %s68, 0
      %s71 = sadd.s32 %s70, 1
      %s72 = scalar_select %p69, %s70, %s71
      %p75 = pneg %p69
      %p76 = scmp.eq.s32.totalorder %s13, 1
      %p77 = por %p75, %p76
      %p78 = scmp.ne.s32.totalorder %s70, %s73
      %p79 = scmp.eq.s32.totalorder %s13, 0
      %p80 = por %p78, %p79
      %p81 = scmp.ne.s32.totalorder %s70, %s73
      %p82 = scmp.eq.s32.totalorder %s18, 1
      %p83 = por %p81, %p82
      %p84 = scmp.ne.s32.totalorder %s73, %s74
      %p85 = scmp.eq.s32.totalorder %s18, 0
      %p86 = por %p84, %p85
      %p87 = scmp.ne.s32.totalorder %s73, %s74
      %p88 = scmp.eq.s32.totalorder %s19, 1
      %p89 = por %p87, %p88
      %p91 = scmp.ne.s32.totalorder %s74, %s90
      %p92 = scmp.eq.s32.totalorder %s19, 0
      %p93 = por %p91, %p92
      %s94 = ssub.s32 %s22, %s31
      %s95 = ssub.s32 %s21, %s35
      %s96 = sor.u32 %s94, %s95
      %p97 = scmp.eq.s32.totalorder %s96, 0
      %s99 = sadd.s32 %s98, 1
      %s100 = scalar_select %p97, %s98, %s99
      %p103 = pneg %p97
      %p104 = scmp.eq.s32.totalorder %s13, 1
      %p105 = por %p103, %p104
      %p106 = scmp.ne.s32.totalorder %s98, %s101
      %p107 = scmp.eq.s32.totalorder %s13, 0
      %p108 = por %p106, %p107
      %p109 = scmp.ne.s32.totalorder %s98, %s101
      %p110 = scmp.eq.s32.totalorder %s18, 1
      %p111 = por %p109, %p110
      %p112 = scmp.ne.s32.totalorder %s101, %s102
      %p113 = scmp.eq.s32.totalorder %s18, 0
      %p114 = por %p112, %p113
      %p115 = scmp.ne.s32.totalorder %s101, %s102
      %p116 = scmp.eq.s32.totalorder %s19, 1
      %p117 = por %p115, %p116
      %p119 = scmp.ne.s32.totalorder %s102, %s118
      %p120 = scmp.eq.s32.totalorder %s19, 0
      %p121 = por %p119, %p120
      %s122 = ssub.s32 %s21, %s35
      %p123 = scmp.eq.s32.totalorder %s122, 0
      %s125 = sadd.s32 %s124, 1
      %s126 = scalar_select %p123, %s124, %s125
      %p129 = pneg %p123
      %p130 = scmp.eq.s32.totalorder %s13, 1
      %p131 = por %p129, %p130
      %p132 = scmp.ne.s32.totalorder %s124, %s127
      %p133 = scmp.eq.s32.totalorder %s13, 0
      %p134 = por %p132, %p133
      %p135 = scmp.ne.s32.totalorder %s124, %s127
      %p136 = scmp.eq.s32.totalorder %s18, 1
      %p137 = por %p135, %p136
      %p138 = scmp.ne.s32.totalorder %s127, %s128
      %p139 = scmp.eq.s32.totalorder %s18, 0
      %p140 = por %p138, %p139
      %p141 = scmp.ne.s32.totalorder %s127, %s128
      %p142 = scmp.eq.s32.totalorder %s19, 1
      %p143 = por %p141, %p142
      %p145 = scmp.ne.s32.totalorder %s128, %s144
      %p146 = scmp.eq.s32.totalorder %s19, 0
      %p147 = por %p145, %p146
      %s148 = ssub.s32 %s20, %s39
      %s149 = ssub.s32 %s21, %s35
      %s150 = sor.u32 %s148, %s149
      %p151 = scmp.eq.s32.totalorder %s150, 0
      %s153 = sadd.s32 %s152, 1
      %s154 = scalar_select %p151, %s152, %s153
      %p157 = pneg %p151
      %p158 = scmp.eq.s32.totalorder %s13, 1
      %p159 = por %p157, %p158
      %p160 = scmp.ne.s32.totalorder %s152, %s155
      %p161 = scmp.eq.s32.totalorder %s13, 0
      %p162 = por %p160, %p161
      %p163 = scmp.ne.s32.totalorder %s152, %s155
      %p164 = scmp.eq.s32.totalorder %s18, 1
      %p165 = por %p163, %p164
      %p166 = scmp.ne.s32.totalorder %s155, %s156
      %p167 = scmp.eq.s32.totalorder %s18, 0
      %p168 = por %p166, %p167
      %p169 = scmp.ne.s32.totalorder %s155, %s156
      %p170 = scmp.eq.s32.totalorder %s19, 1
      %p171 = por %p169, %p170
      %p173 = scmp.ne.s32.totalorder %s156, %s172
      %p174 = scmp.eq.s32.totalorder %s19, 0
      %p175 = por %p173, %p174
      %p176 = scmp.le.s32.totalorder 1, %s13
      %p177 = scmp.lt.s32.totalorder %s13, 3
      %p178 = pnand %p176, %p177
      %p179 = pneg %p178
      // Predicated region
      $region9: #{tpu_custom_call.1} parent=5 // pred_check
        _
      $region10: #{tpu_custom_call.1} parent=5 // pred_check_branch
        %181 = sbr.rel (%p178) target = $region12
      $region11: #{tpu_custom_call.1} parent=5 // pred_region
        %s182 = ssub.s32 %s13, 1
        // Predicated region
        $region13: #{tpu_custom_call.1} parent=11 // pred_check
          %p183 = pneg %p86
        $region14: #{tpu_custom_call.1} parent=11 // pred_check_branch
          %185 = sbr.rel (%p183) target = $region16
        $region15: #{tpu_custom_call.1} parent=11 // pred_region
          %p186 = scmp.lt.s32.totalorder %s25, 0
          %s187 = scalar_select %p186, %s25, 0
          %s188 = smul.addr %s187, 2
          %s189 = scalar_lea.vmem %s1, %s188
        $region16: #{tpu_custom_call.1} parent=11 // pred_fallthru
          _
        // Predicated region
        $region17: #{tpu_custom_call.1} parent=11 // pred_check
          %p190 = pneg %p114
        $region18: #{tpu_custom_call.1} parent=11 // pred_check_branch
          %192 = sbr.rel (%p190) target = $region20
        $region19: #{tpu_custom_call.1} parent=11 // pred_region
          %s193 = smul.u32 4, %s25
          %p194 = scmp.lt.s32.totalorder %s193, 3
          %s195 = scalar_select %p194, %s193, 3
          %p196 = scmp.lt.s32.totalorder %s24, 0
          %s197 = scalar_select %p196, %s24, 0
          %s198 = sadd.s32 %s197, %s195
          %s199 = smul.addr %s198, 4
          %s200 = scalar_lea.vmem %s2, %s199
          %s201 = smul.u32 4, %s25
        $region20: #{tpu_custom_call.1} parent=11 // pred_fallthru
          _
        // Predicated region
        $region21: #{tpu_custom_call.1} parent=11 // pred_check
          %p202 = pneg %p140
        $region22: #{tpu_custom_call.1} parent=11 // pred_check_branch
          %204 = sbr.rel (%p202) target = $region24
        $region23: #{tpu_custom_call.1} parent=11 // pred_region
          %p205 = scmp.lt.s32.totalorder %s24, 0
          %s206 = scalar_select %p205, %s24, 0
          %s207 = scalar_lea.vmem %s3, %s206
        $region24: #{tpu_custom_call.1} parent=11 // pred_fallthru
          _
      $region12: #{tpu_custom_call.1} parent=5 // pred_fallthru
        _
      %p208 = scmp.lt.s32.totalorder %s13, 2
      // Predicated region
      $region25: #{tpu_custom_call.1} parent=5 // pred_check
        %p209 = pneg %p208
      $region26: #{tpu_custom_call.1} parent=5 // pred_check_branch
        %211 = sbr.rel (%p209) target = $region28
      $region27: #{tpu_custom_call.1} parent=5 // pred_region
        // Predicated region
        $region29: #{tpu_custom_call.1} parent=27 // pred_check
          %p212 = pneg %p54
        $region30: #{tpu_custom_call.1} parent=27 // pred_check_branch
          %214 = sbr.rel (%p212) target = $region32
        $region31: #{tpu_custom_call.1} parent=27 // pred_region
          %s215 = smul.u32 13, %s20
          %s216 = ssub.s32 25, %s215
          %p217 = scmp.lt.s32.totalorder %s216, 13
          %s218 = scalar_select %p217, %s216, 13
          %s219 = smul.u32 8, %s218
          %p220 = scmp.lt.s32.totalorder %s215, 24
          %s221 = scalar_select %p220, %s215, 24
          %p222 = scmp.lt.s32.totalorder %s22, 0
          %s223 = scalar_select %p222, %s22, 0
          %s224 = sadd.s32 %s223, %s221
          %s225 = smul.addr %s224, 8
          %s226 = scalar_lea.vmem %s0, %s225
          %s227 = smul.u32 13, %s20
          %s228 = ssub.s32 25, %s227
          %p229 = scmp.lt.s32.totalorder %s228, 13
          %s230 = scalar_select %p229, %s228, 13
          %s231 = smul.u32 8, %s230
        $region32: #{tpu_custom_call.1} parent=27 // pred_fallthru
          _
      $region28: #{tpu_custom_call.1} parent=5 // pred_fallthru
        _
      %p232 = scmp.le.s32.totalorder 1, %s13
      %p233 = scmp.lt.s32.totalorder %s13, 3
      %p234 = pnand %p232, %p233
      %p235 = pneg %p234
      // Predicated region
      $region33: #{tpu_custom_call.1} parent=5 // pred_check
        _
      $region34: #{tpu_custom_call.1} parent=5 // pred_check_branch
        %237 = sbr.rel (%p234) target = $region36
      $region35: #{tpu_custom_call.1} parent=5 // pred_region
        %s238 = ssub.s32 %s13, 1
        %s239 = smul.u32 13, %s23
        %s240 = ssub.s32 25, %s239
        %p241 = scmp.lt.s32.totalorder %s240, 13
        %s242 = scalar_select %p241, %s240, 13
        %s243 = smul.u32 8, %s242
        %p244 = scmp.lt.s32.totalorder %s239, 24
        %s245 = scalar_select %p244, %s239, 24
        %p246 = scmp.lt.s32.totalorder %s25, 0
        %s247 = scalar_select %p246, %s25, 0
        %s248 = sadd.s32 %s247, %s245
        %s249 = smul.addr %s248, 8
        %s250 = scalar_lea.vmem %s0, %s249
        %p251 = pneg %p60
        %p252 = pneg %p57
        %p253 = scmp.lt.s32.totalorder %s25, 0
        %s254 = scalar_select %p253, %s25, 0
        %s255 = smul.addr %s254, 2
        %s256 = scalar_lea.vmem %s1, %s255
        %p257 = pneg %p86
        %p258 = pneg %p83
        %s259 = smul.u32 4, %s25
        %p260 = scmp.lt.s32.totalorder %s259, 3
        %s261 = scalar_select %p260, %s259, 3
        %p262 = scmp.lt.s32.totalorder %s24, 0
        %s263 = scalar_select %p262, %s24, 0
        %s264 = sadd.s32 %s263, %s261
        %s265 = smul.addr %s264, 4
        %s266 = scalar_lea.vmem %s2, %s265
        %p267 = pneg %p114
        %p268 = pneg %p111
        %p269 = scmp.lt.s32.totalorder %s24, 0
        %s270 = scalar_select %p269, %s24, 0
        %s271 = scalar_lea.vmem %s3, %s270
        %p272 = pneg %p140
        %p273 = pneg %p137
        %p274 = pneg %p168
        %p275 = pneg %p165
        %s276 = sand.u32 %s155, 1
        %s277 = scalar_lea.sflag [#allocation3], %s276
        %s278 = sand.u32 %s155, 1
        %s279 = smul.addr %s278, 104
        %s280 = scalar_lea.vmem [#allocation2], %s279
        %s281 = smul.u32 13, %s23
        %s282 = ssub.s32 25, %s281
        %p283 = scmp.lt.s32.totalorder %s282, 13
        %s284 = scalar_select %p283, %s282, 13
        %s285 = smul.u32 8, %s284
        %p286 = scmp.lt.s32.totalorder %s281, 24
        %s287 = scalar_select %p286, %s281, 24
        %p288 = scmp.lt.s32.totalorder %s25, 0
        %s289 = scalar_select %p288, %s25, 0
        %s290 = sadd.s32 %s289, %s287
        %s291 = smul.addr %s290, 8
        %s292 = scalar_lea.vmem %s0, %s291
        %s293 = smul.u32 13, %s23
        %s294 = ssub.s32 25, %s293
        %p295 = scmp.lt.s32.totalorder %s294, 13
        %s296 = scalar_select %p295, %s294, 13
        %s297 = smul.u32 8, %s296
        %p298 = scmp.lt.s32.totalorder %s25, 0
        %s299 = scalar_select %p298, %s25, 0
        %s300 = smul.addr %s299, 2
        %s301 = scalar_lea.vmem %s1, %s300
        %s302 = smul.u32 4, %s25
        %p303 = scmp.lt.s32.totalorder %s302, 3
        %s304 = scalar_select %p303, %s302, 3
        %p305 = scmp.lt.s32.totalorder %s24, 0
        %s306 = scalar_select %p305, %s24, 0
        %s307 = sadd.s32 %s306, %s304
        %s308 = smul.addr %s307, 4
        %s309 = scalar_lea.vmem %s2, %s308
        %s310 = smul.u32 4, %s25
        %p311 = scmp.lt.s32.totalorder %s24, 0
        %s312 = scalar_select %p311, %s24, 0
        %s313 = scalar_lea.vmem %s3, %s312
        %s314 = smul.u32 13, %s23
        %s315 = ssub.s32 25, %s314
        %p316 = scmp.lt.s32.totalorder %s315, 13
        %s317 = scalar_select %p316, %s315, 13
        %s318 = smul.u32 8, %s317
        %p320 = scmp.eq.s32.totalorder %s25, 0
        // Predicated region
        $region37: #{tpu_custom_call.1} parent=35 // pred_check
          %p321 = pneg %p320
        $region38: #{tpu_custom_call.1} parent=35 // pred_check_branch
          %323 = sbr.rel (%p321) target = $region40
        $region39: #{tpu_custom_call.1} parent=35 // pred_region
          %v324 = vld [vmem:[%s313] sm:$0x1]
          %v326 = vperm.slane %v324, 0
          %328 = vst [vmem:[%s280] sm:$0xff] %v326
          %329 = vst [vmem:[%s280 + $0x8] sm:$0xff] %v326
          %330 = vst [vmem:[%s280 + $0x10] sm:$0xff] %v326
          %331 = vst [vmem:[%s280 + $0x18] sm:$0xff] %v326
          %332 = vst [vmem:[%s280 + $0x20] sm:$0xff] %v326
          %333 = vst [vmem:[%s280 + $0x28] sm:$0xff] %v326
          %334 = vst [vmem:[%s280 + $0x30] sm:$0xff] %v326
          %335 = vst [vmem:[%s280 + $0x38] sm:$0xff] %v326
          %336 = vst [vmem:[%s280 + $0x40] sm:$0xff] %v326
          %337 = vst [vmem:[%s280 + $0x48] sm:$0xff] %v326
          %338 = vst [vmem:[%s280 + $0x50] sm:$0xff] %v326
          %339 = vst [vmem:[%s280 + $0x58] sm:$0xff] %v326
          %340 = vst [vmem:[%s280 + $0x60] sm:$0xff] %v326
        $region40: #{tpu_custom_call.1} parent=35 // pred_fallthru
          _
        %v341 = vld [vmem:[%s301] sm:$0x1]
        %v342 = vld [vmem:[%s301 + $0x1] sm:$0x1]
        %v343 = vld [vmem:[%s292] sm:$0xff]
        %v344 = vld [vmem:[%s292 + $0x8] sm:$0xff]
        %v345 = vld [vmem:[%s292 + $0x10] sm:$0xff]
        %v346 = vld [vmem:[%s292 + $0x18] sm:$0xff]
        %v347 = vld [vmem:[%s292 + $0x20] sm:$0xff]
        %v348 = vld [vmem:[%s292 + $0x28] sm:$0xff]
        %v349 = vld [vmem:[%s292 + $0x30] sm:$0xff]
        %v350 = vld [vmem:[%s292 + $0x38] sm:$0xff]
        %v351 = vld [vmem:[%s292 + $0x40] sm:$0xff]
        %v352 = vld [vmem:[%s292 + $0x48] sm:$0xff]
        %v353 = vld [vmem:[%s292 + $0x50] sm:$0xff]
        %v354 = vld [vmem:[%s292 + $0x58] sm:$0xff]
        %v355 = vld [vmem:[%s292 + $0x60] sm:$0xff]
        %v356 = vperm.slane %v341, 0
        %v357 = vmul.f32 %v343, %v356
        %v358 = vmul.f32 %v344, %v356
        %v359 = vmul.f32 %v345, %v356
        %v360 = vmul.f32 %v346, %v356
        %v361 = vmul.f32 %v347, %v356
        %v362 = vmul.f32 %v348, %v356
        %v363 = vmul.f32 %v349, %v356
        %v364 = vmul.f32 %v350, %v356
        %v365 = vmul.f32 %v351, %v356
        %v366 = vmul.f32 %v352, %v356
        %v367 = vmul.f32 %v353, %v356
        %v368 = vmul.f32 %v354, %v356
        %v369 = vmul.f32 %v355, %v356
        %v370 = vperm.slane %v342, 0
        %v371 = vadd.f32 %v357, %v370
        %v372 = vadd.f32 %v358, %v370
        %v373 = vadd.f32 %v359, %v370
        %v374 = vadd.f32 %v360, %v370
        %v375 = vadd.f32 %v361, %v370
        %v376 = vadd.f32 %v362, %v370
        %v377 = vadd.f32 %v363, %v370
        %v378 = vadd.f32 %v364, %v370
        %v379 = vadd.f32 %v365, %v370
        %v380 = vadd.f32 %v366, %v370
        %v381 = vadd.f32 %v367, %v370
        %v382 = vadd.f32 %v368, %v370
        %v383 = vadd.f32 %v369, %v370
        %v384 = vmax.f32 %v371, 0.0
        %v385 = vmax.f32 %v372, 0.0
        %v386 = vmax.f32 %v373, 0.0
        %v387 = vmax.f32 %v374, 0.0
        %v388 = vmax.f32 %v375, 0.0
        %v389 = vmax.f32 %v376, 0.0
        %v390 = vmax.f32 %v377, 0.0
        %v391 = vmax.f32 %v378, 0.0
        %v392 = vmax.f32 %v379, 0.0
        %v393 = vmax.f32 %v380, 0.0
        %v394 = vmax.f32 %v381, 0.0
        %v395 = vmax.f32 %v382, 0.0
        %v396 = vmax.f32 %v383, 0.0
        %v397 = vld [vmem:[%s280] sm:$0xff]
        %v398 = vld [vmem:[%s280 + $0x8] sm:$0xff]
        %v399 = vld [vmem:[%s280 + $0x10] sm:$0xff]
        %v400 = vld [vmem:[%s280 + $0x18] sm:$0xff]
        %v401 = vld [vmem:[%s280 + $0x20] sm:$0xff]
        %v402 = vld [vmem:[%s280 + $0x28] sm:$0xff]
        %v403 = vld [vmem:[%s280 + $0x30] sm:$0xff]
        %v404 = vld [vmem:[%s280 + $0x38] sm:$0xff]
        %v405 = vld [vmem:[%s280 + $0x40] sm:$0xff]
        %v406 = vld [vmem:[%s280 + $0x48] sm:$0xff]
        %v407 = vld [vmem:[%s280 + $0x50] sm:$0xff]
        %v408 = vld [vmem:[%s280 + $0x58] sm:$0xff]
        %v409 = vld [vmem:[%s280 + $0x60] sm:$0xff]
        %v410 = vpack.c.bf16 %v385, %v384
        %v411 = vpack.c.bf16 %v387, %v386
        %v412 = vpack.c.bf16 %v389, %v388
        %v413 = vpack.c.bf16 %v391, %v390
        %v414 = vpack.c.bf16 %v393, %v392
        %v415 = vpack.c.bf16 %v395, %v394
        %v416 = vpack.c.bf16 %v396, %v396
        %v417 = vld [vmem:[%s309] sm:$0xf]
        %v418 = vld [vmem:[%s309 + $0x4] sm:$0xf]
        %v419 = vld [vmem:[%s309 + $0x8] sm:$0xf]
        %v420 = vld [vmem:[%s309 + $0xc] sm:$0xf]
        %v425 = vunpack.c.l.b16 %v417
        %v426 = vunpack.c.l.b16 %v418
        %v427 = vunpack.c.l.b16 %v419
        %v428 = vunpack.c.l.b16 %v420
        %v429 = vpack.c.b16 %v426, %v425
        %v430 = vpack.c.b16 %v428, %v427
        %vm433 = vcmask 261120
        %v435 = vsel %vm433, %v410, 0
        %v438 = vsel %vm433, %v411, 0
        %v441 = vsel %vm433, %v412, 0
        %v444 = vsel %vm433, %v413, 0
        %v447 = vsel %vm433, %v414, 0
        %v450 = vsel %vm433, %v415, 0
        %v453 = vsel %vm433, %v416, 0
        %455 = vmatpush.bf16.msra.mxu0 0
        %456 = vmatpush.bf16.msra.mxu0 0
        %457 = vmatpush.bf16.msra.mxu0 0
        %458 = vmatpush.bf16.msra.mxu0 0
        %459 = vmatpush.bf16.msra.mxu0 0
        %460 = vmatpush.bf16.msra.mxu0 0
        %461 = vmatpush.bf16.msra.mxu0 %v430
        %462 = vmatpush.bf16.msra.mxu0 %v429
        %463 = vmatmul.bf16.gmra.mxu0 %v435
        %v464 = vpop.f32.mrf.mxu0
        %v465 = vadd.f32 0.0, %v464
        %v466 = vpop.f32.mrf.mxu0
        %v467 = vadd.f32 0.0, %v466
        %468 = vmatmul.bf16.gmra.mxu0 %v438
        %v469 = vpop.f32.mrf.mxu0
        %v470 = vadd.f32 0.0, %v469
        %v471 = vpop.f32.mrf.mxu0
        %v472 = vadd.f32 0.0, %v471
        %473 = vmatmul.bf16.gmra.mxu0 %v441
        %v474 = vpop.f32.mrf.mxu0
        %v475 = vadd.f32 0.0, %v474
        %v476 = vpop.f32.mrf.mxu0
        %v477 = vadd.f32 0.0, %v476
        %478 = vmatmul.bf16.gmra.mxu0 %v444
        %v479 = vpop.f32.mrf.mxu0
        %v480 = vadd.f32 0.0, %v479
        %v481 = vpop.f32.mrf.mxu0
        %v482 = vadd.f32 0.0, %v481
        %483 = vmatmul.bf16.gmra.mxu0 %v447
        %v484 = vpop.f32.mrf.mxu0
        %v485 = vadd.f32 0.0, %v484
        %v486 = vpop.f32.mrf.mxu0
        %v487 = vadd.f32 0.0, %v486
        %488 = vmatmul.bf16.gmra.mxu0 %v450
        %v489 = vpop.f32.mrf.mxu0
        %v490 = vadd.f32 0.0, %v489
        %v491 = vpop.f32.mrf.mxu0
        %v492 = vadd.f32 0.0, %v491
        %493 = vmatmul.bf16.gmra.mxu0 %v453
        %v494 = vpop.f32.mrf.mxu0
        %v495 = vadd.f32 0.0, %v494
        %v496 = vpop.f32.mrf.mxu0
        %497 = vdwg.mxu0
        %v498 = vadd.f32 %v397, %v465
        %v499 = vadd.f32 %v398, %v467
        %v500 = vadd.f32 %v399, %v470
        %v501 = vadd.f32 %v400, %v472
        %v502 = vadd.f32 %v401, %v475
        %v503 = vadd.f32 %v402, %v477
        %v504 = vadd.f32 %v403, %v480
        %v505 = vadd.f32 %v404, %v482
        %v506 = vadd.f32 %v405, %v485
        %v507 = vadd.f32 %v406, %v487
        %v508 = vadd.f32 %v407, %v490
        %v509 = vadd.f32 %v408, %v492
        %v510 = vadd.f32 %v409, %v495
        %511 = vst [vmem:[%s280] sm:$0xff] %v498
        %512 = vst [vmem:[%s280 + $0x8] sm:$0xff] %v499
        %513 = vst [vmem:[%s280 + $0x10] sm:$0xff] %v500
        %514 = vst [vmem:[%s280 + $0x18] sm:$0xff] %v501
        %515 = vst [vmem:[%s280 + $0x20] sm:$0xff] %v502
        %516 = vst [vmem:[%s280 + $0x28] sm:$0xff] %v503
        %517 = vst [vmem:[%s280 + $0x30] sm:$0xff] %v504
        %518 = vst [vmem:[%s280 + $0x38] sm:$0xff] %v505
        %519 = vst [vmem:[%s280 + $0x40] sm:$0xff] %v506
        %520 = vst [vmem:[%s280 + $0x48] sm:$0xff] %v507
        %521 = vst [vmem:[%s280 + $0x50] sm:$0xff] %v508
        %522 = vst [vmem:[%s280 + $0x58] sm:$0xff] %v509
        %523 = vst [vmem:[%s280 + $0x60] sm:$0xff] %v510
        %s524 = sand.u32 %s155, 1
        %s525 = scalar_lea.sflag [#allocation3], %s524
        %s526 = sand.u32 %s155, 1
        %s527 = smul.addr %s526, 104
        %s528 = scalar_lea.vmem [#allocation2], %s527
        // Predicated region
        $region41: #{tpu_custom_call.1} parent=35 // pred_check
          %p529 = pneg %p165
        $region42: #{tpu_custom_call.1} parent=35 // pred_check_branch
          %531 = sbr.rel (%p529) target = $region44
        $region43: #{tpu_custom_call.1} parent=35 // pred_region
          %s532 = smul.u32 13, %s23
          %s533 = ssub.s32 25, %s532
          %p534 = scmp.lt.s32.totalorder %s533, 13
          %s535 = scalar_select %p534, %s533, 13
          %s536 = smul.u32 8, %s535
          %s537 = ssub.s32 104, %s536
          %s538 = sshll.u32 %s537, 4
          %539 = vsyncadd %s525, %s538
          %p540 = scmp.ne.s32.totalorder 0, %s536
          %s541 = sadd.s32 %s24, %s532
          %s542 = smul.addr %s541, 8
          %s543 = scalar_lea.hbm %s4, %s542
          %s544 = smul.u32 8, %s535
          %s545 = sshll.u32 %s528, 4
          %s546 = int_to_ptr.vmem [resolvable:$true] %s545
          %s547 = sshll.u32 %s543, 4
          %s548 = int_to_ptr.hbm [resolvable:$true] %s547
          %s549 = sshll.u32 %s544, 4
          %553 = dma.vmem_to_hbm [thread:$0]  (%p540), %s546, %s549, %s548, %s525, 128, 128, 8
        $region44: #{tpu_custom_call.1} parent=35 // pred_fallthru
          _
      $region36: #{tpu_custom_call.1} parent=5 // pred_fallthru
        _
      %p554 = scmp.le.s32.totalorder 2, %s13
      // Predicated region
      $region45: #{tpu_custom_call.1} parent=5 // pred_check
        %p555 = pneg %p554
      $region46: #{tpu_custom_call.1} parent=5 // pred_check_branch
        %557 = sbr.rel (%p555) target = $region48
      $region47: #{tpu_custom_call.1} parent=5 // pred_region
        %s558 = ssub.s32 %s13, 2
        // Predicated region
        $region49: #{tpu_custom_call.1} parent=47 // pred_check
          %p559 = pneg %p171
        $region50: #{tpu_custom_call.1} parent=47 // pred_check_branch
          %561 = sbr.rel (%p559) target = $region52
        $region51: #{tpu_custom_call.1} parent=47 // pred_region
          %s562 = sand.u32 %s156, 1
          %s563 = scalar_lea.sflag [#allocation3], %s562
          %s564 = sand.u32 %s156, 1
          %s565 = smul.addr %s564, 104
          %s566 = scalar_lea.vmem [#allocation2], %s565
          %568 = dma.done %s563, 1664
        $region52: #{tpu_custom_call.1} parent=47 // pred_fallthru
          _
      $region48: #{tpu_custom_call.1} parent=5 // pred_fallthru
        _
    $region6: #{tpu_custom_call.1} parent=1 // loop_footer
      %s17 = sadd.s32 1, %s13
    $region7: #{tpu_custom_call.1} parent=1 // loop_footer_branch
      %12 = sbr.rel target = $region3
    $region8: #{tpu_custom_call.1} parent=1 // loop_exit
      _
    %569 = vsyncpa [#allocation3], 1
    %s570 = scalar_lea.sflag [#allocation3], 1
    %571 = vsyncpa %s570, 1

</llo_original>
